<compile_context>
chip_gen: v7x
topology: tpu7x:2x2x1
jax: 0.10.0
libtpu: 0.0.40
codegen_flags: <defaults>
</compile_context>

<pallas_src>
import functools

import jax
import jax.numpy as jnp
import numpy as np
from jax.experimental import pallas as pl
from jax.experimental.pallas import tpu as pltpu

# ---------------------------------------------------------------------------
# supported sets (mirrors the PyTorch module's __init__ validation)
# ---------------------------------------------------------------------------
_all = ["none", "relu", "tanh", "softplus", "sigmoid", "softmax"]
_all_wo_softmax = ["none", "relu", "tanh", "softplus", "sigmoid"]
_bounded = ["sigmoid", "softmax"]
_common = ["relu", "sigmoid"]
_positive = ["relu", "softplus", "sigmoid", "softmax"]
_positive_wo_softmax = ["relu", "softplus", "sigmoid"]
_positive_wo_softplus = ["relu", "sigmoid", "softmax"]
_unbounded = ["none", "relu", "tanh", "softplus"]

_SUPPORTED_SET = {
    "positive": _positive,
    "positive_wo_softmax": _positive_wo_softmax,
    "positive_wo_softplus": _positive_wo_softplus,
    "all": _all,
    "all_wo_softmax": _all_wo_softmax,
    "bounded": _bounded,
    "unbounded": _unbounded,
    "common": _common,
}

_SUBLANE = 8
_LANE = 128
# ~1 MiB (f32) worth of elements per block buffer.
_TARGET_BLOCK_ELEMS = 256 * 1024


def _ceil_div(a, b):
    return -(-a // b)


def _round_up(a, b):
    return _ceil_div(a, b) * b


def _pick_lane_width(total):
    """Largest lane-aligned width (<=1024) that divides the element count."""
    for w in (1024, 512, 256, 128):
        if total % w == 0:
            return w
    return None


def _plan_rows(rows, target_rows):
    """Pick (block_rows, grid_n): block_rows multiple of 8 (or == rows), block
    sized near the VMEM target, >= 2 grid steps when there is enough work so
    both v7x TensorCores get fed.  Ragged tails are left to Pallas boundary
    masking (no padding)."""
    if rows <= _SUBLANE:
        return rows, 1
    grid_n = max(1, _ceil_div(rows, max(1, target_rows)))
    if rows > 2 * _SUBLANE:
        grid_n = max(grid_n, 2)
    block_rows = _round_up(_ceil_div(rows, grid_n), _SUBLANE)
    if block_rows >= rows:
        return rows, 1
    return block_rows, _ceil_div(rows, block_rows)


# ---------------------------------------------------------------------------
# Pallas kernels
# ---------------------------------------------------------------------------
def _apply_epilogue(out, scale, vmax, vmin):
    if scale != 1.0:
        out = out * jnp.asarray(scale, out.dtype)
    if vmax is not None:
        out = jnp.minimum(out, jnp.asarray(vmax, out.dtype))  # th.clamp_max
    if vmin is not None:
        out = jnp.maximum(out, jnp.asarray(vmin, out.dtype))  # th.clamp_min
    return out


def _elementwise_kernel(x_ref, o_ref, *, non_linear, scale, vmax, vmin):
    x = x_ref[...]  # (block_rows, W) dense slab

    if non_linear == "none":
        out = x  # native dtype, no cast
    elif non_linear == "relu":
        out = jnp.maximum(x, 0.0)  # native dtype, no cast
    elif non_linear == "tanh":
        out = jnp.tanh(x.astype(jnp.float32))
    elif non_linear == "softplus":
        xf = x.astype(jnp.float32)
        # numerically stable softplus: max(x, 0) + log1p(exp(-|x|))
        out = jnp.maximum(xf, 0.0) + jnp.log1p(jnp.exp(-jnp.abs(xf)))
    elif non_linear == "sigmoid":
        xf = x.astype(jnp.float32)
        out = 1.0 / (1.0 + jnp.exp(-xf))
    else:
        raise ValueError(f"Unsupported nonlinear: {non_linear}")

    out = _apply_epilogue(out, scale, vmax, vmin)
    o_ref[...] = out.astype(o_ref.dtype)


def _softmax_kernel(x_ref, o_ref, *, scale, vmax, vmin):
    # block is (S, block_rows, W): S fully resident -> in-block axis-0 reduce
    x = x_ref[...].astype(jnp.float32)
    m = jnp.max(x, axis=0, keepdims=True)
    e = jnp.exp(x - m)
    out = e / jnp.sum(e, axis=0, keepdims=True)
    out = _apply_epilogue(out, scale, vmax, vmin)
    o_ref[...] = out.astype(o_ref.dtype)


# ---------------------------------------------------------------------------
# Python wrapper mirroring the PyTorch module
# ---------------------------------------------------------------------------
class MaskNonLinear:
    def __init__(self, non_linear, enable="all", scale=1.0, vmax=None, vmin=None):
        if non_linear not in _SUPPORTED_SET[enable]:
            raise ValueError(f"Unsupported nonlinear: {non_linear}")
        self.non_linear = non_linear
        self.scale = float(scale)
        self.vmax = vmax
        self.vmin = vmin

    def __call__(self, inp):
        if inp.ndim not in (3, 4):
            raise RuntimeError(
                f"MaskNonLinear expects 3/4D tensor, got {inp.ndim}"
            )
        if (self.non_linear == "none" and self.scale == 1.0
                and self.vmax is None and self.vmin is None):
            return inp  # pure identity: no HBM traffic needed
        if self.non_linear == "softmax":
            return self._softmax_forward(inp)
        return self._elementwise_forward(inp)

    # -- elementwise path: zero-copy dense (rows, W) slab ---------------------
    def _elementwise_forward(self, inp):
        shape = inp.shape
        dtype = inp.dtype
        itemsize = jnp.dtype(dtype).itemsize
        total = int(np.prod(shape))

        w = _pick_lane_width(total)
        if w is None:
            w = shape[-1]  # natural last dim (possibly lane-masked, still zero-copy)
        rows = total // w
        x2 = inp.reshape(rows, w)  # free reshape, no pad, no copy

        target_rows = max(1, _TARGET_BLOCK_ELEMS // w)
        block_rows, grid_n = _plan_rows(rows, target_rows)

        kernel = functools.partial(
            _elementwise_kernel,
            non_linear=self.non_linear,
            scale=self.scale,
            vmax=self.vmax,
            vmin=self.vmin,
        )
        is_transcendental = self.non_linear in ("tanh", "softplus", "sigmoid")

        out2 = pl.pallas_call(
            kernel,
            out_shape=jax.ShapeDtypeStruct((rows, w), dtype),
            grid=(grid_n,),
            in_specs=[pl.BlockSpec((block_rows, w), lambda i: (i, 0))],
            out_specs=pl.BlockSpec((block_rows, w), lambda i: (i, 0)),
            compiler_params=pltpu.CompilerParams(
                dimension_semantics=("parallel",)),
            cost_estimate=pl.CostEstimate(
                flops=4 * total,
                transcendentals=total if is_transcendental else 0,
                bytes_accessed=2 * total * itemsize),
        )(x2)

        return out2.reshape(shape)

    # -- softmax path: (S, rows, W) with S resident in the block --------------
    def _softmax_forward(self, inp):
        shape = inp.shape
        dtype = inp.dtype
        itemsize = jnp.dtype(dtype).itemsize
        S = shape[0]
        M = int(np.prod(shape[1:]))

        w = _pick_lane_width(M)
        if w is None:
            w = shape[-1]  # natural last dim; M is always a multiple of it
        rows = M // w
        x3 = inp.reshape(S, rows, w)  # free reshape, no pad, no copy

        target_rows = max(1, _TARGET_BLOCK_ELEMS // (S * w))
        block_rows, grid_n = _plan_rows(rows, target_rows)

        kernel = functools.partial(
            _softmax_kernel, scale=self.scale, vmax=self.vmax, vmin=self.vmin)

        out3 = pl.pallas_call(
            kernel,
            out_shape=jax.ShapeDtypeStruct((S, rows, w), dtype),
            grid=(grid_n,),
            in_specs=[pl.BlockSpec((S, block_rows, w), lambda i: (0, i, 0))],
            out_specs=pl.BlockSpec((S, block_rows, w), lambda i: (0, i, 0)),
            compiler_params=pltpu.CompilerParams(
                dimension_semantics=("parallel",)),
            cost_estimate=pl.CostEstimate(
                flops=6 * S * M,
                transcendentals=S * M,
                bytes_accessed=2 * S * M * itemsize),
        )(x3)

        return out3.reshape(shape)


# ---------------------------------------------------------------------------
# pure-JAX reference for correctness check
# ---------------------------------------------------------------------------
def _reference(inp, non_linear, scale, vmax, vmin):
    x = inp.astype(jnp.float32)
    fns = {
        "none": lambda t: t,
        "relu": lambda t: jnp.maximum(t, 0.0),
        "tanh": jnp.tanh,
        "softplus": jax.nn.softplus,
        "sigmoid": jax.nn.sigmoid,
        "softmax": lambda t: jax.nn.softmax(t, axis=0),
    }
    out = fns[non_linear](x) * scale
    if vmax is not None:
        out = jnp.minimum(out, vmax)
    if vmin is not None:
        out = jnp.maximum(out, vmin)
    return out.astype(inp.dtype)


if __name__ == "__main__":
    key = jax.random.PRNGKey(0)
    keys = jax.random.split(key, 6)

    # (S, N, F, T) 4-D and (S, N, T) 3-D mask tensors
    x4 = jax.random.normal(keys[0], (2, 4, 16, 16), dtype=jnp.float32)
    x3 = jax.random.normal(keys[1], (2, 4, 160), dtype=jnp.float32)
    xb = jax.random.normal(keys[2], (2, 4, 16, 16), dtype=jnp.bfloat16)
    # multi-step grid + ragged boundary block (rows not a multiple of block)
    x_big = jax.random.normal(keys[3], (2, 5, 40, 64), dtype=jnp.float32)
    # totally lane-unaligned shape -> natural-view fallback path
    x_odd = jax.random.normal(keys[4], (2, 3, 5, 7), dtype=jnp.float32)
    # aligned lane width but ragged row tail for the elementwise path
    x_rag = jax.random.normal(keys[5], (2, 4, 24, 100), dtype=jnp.float32)

    cases = [
        (x4, dict(non_linear="softmax", enable="positive", scale=1.0, vmax=None, vmin=None), 1e-5),
        (x4, dict(non_linear="sigmoid", enable="common", scale=2.0, vmax=1.5, vmin=0.1), 1e-5),
        (x4, dict(non_linear="relu", enable="all", scale=1.0, vmax=None, vmin=None), 1e-5),
        (x4, dict(non_linear="softplus", enable="unbounded", scale=0.5, vmax=None, vmin=None), 1e-5),
        (x4, dict(non_linear="tanh", enable="all_wo_softmax", scale=1.0, vmax=0.9, vmin=-0.9), 1e-5),
        (x4, dict(non_linear="none", enable="all", scale=3.0, vmax=2.0, vmin=-2.0), 1e-5),
        (x3, dict(non_linear="softmax", enable="bounded", scale=1.0, vmax=None, vmin=None), 1e-5),
        (x3, dict(non_linear="sigmoid", enable="bounded", scale=1.0, vmax=None, vmin=None), 1e-5),
        (xb, dict(non_linear="relu", enable="common", scale=1.0, vmax=None, vmin=None), 2e-2),
        (x_big, dict(non_linear="softmax", enable="positive_wo_softplus", scale=1.0, vmax=None, vmin=None), 1e-5),
        (x_big, dict(non_linear="sigmoid", enable="positive", scale=1.0, vmax=None, vmin=None), 1e-5),
        (x_odd, dict(non_linear="softmax", enable="all", scale=1.0, vmax=None, vmin=None), 1e-5),
        (x_odd, dict(non_linear="tanh", enable="unbounded", scale=1.0, vmax=None, vmin=None), 1e-5),
        (x_rag, dict(non_linear="relu", enable="positive", scale=1.0, vmax=None, vmin=None), 1e-5),
    ]

    for x, cfg, tol in cases:
        mod = MaskNonLinear(
            cfg["non_linear"],
            enable=cfg["enable"],
            scale=cfg["scale"],
            vmax=cfg["vmax"],
            vmin=cfg["vmin"],
        )
        out = mod(x)
        out = jax.block_until_ready(out)
        ref = _reference(x, cfg["non_linear"], cfg["scale"], cfg["vmax"], cfg["vmin"])
        assert out.shape == x.shape and out.dtype == x.dtype
        np.testing.assert_allclose(
            np.asarray(out, dtype=np.float32),
            np.asarray(ref, dtype=np.float32),
            rtol=tol, atol=tol,
        )

    print("KERNEL_OK")
</pallas_src>

<mosaic_0001>
module attributes {stable_mosaic.version = 11 : i64} {
  func.func @_softmax_kernel(%arg0: i32, %arg1: memref<2x1x1024xf32, #tpu.memory_space<vmem>>, %arg2: memref<2x1x1024xf32, #tpu.memory_space<vmem>>) attributes {dimension_semantics = [#tpu.dimension_semantics<parallel>], iteration_bounds = array<i64: 1>, scalar_prefetch = 0 : i64, scratch_operands = 0 : i64, tpu.core_type = #tpu.core_type<tc>, window_params = [{transform_indices = @transform_0, window_bounds = array<i64: 2, 1, 1024>}, {transform_indices = @transform_1, window_bounds = array<i64: 2, 1, 1024>}]} {
    %c0 = arith.constant 0 : index
    %c0_0 = arith.constant 0 : index
    %c0_1 = arith.constant 0 : index
    %0 = vector.load %arg1[%c0, %c0_0, %c0_1] : memref<2x1x1024xf32, #tpu.memory_space<vmem>>, vector<2x1x1024xf32>
    %cst = arith.constant dense<0xFF800000> : vector<1x1024xf32>
    %1 = vector.multi_reduction <maximumf>, %0, %cst [0] : vector<2x1x1024xf32> to vector<1x1024xf32>
    %2 = vector.shape_cast %1 : vector<1x1024xf32> to vector<1x1x1024xf32>
    %3 = vector.broadcast %2 : vector<1x1x1024xf32> to vector<2x1x1024xf32>
    %4 = arith.subf %0, %3 : vector<2x1x1024xf32>
    %5 = math.exp %4 : vector<2x1x1024xf32>
    %cst_2 = arith.constant dense<0.000000e+00> : vector<1x1024xf32>
    %6 = vector.multi_reduction <add>, %5, %cst_2 [0] : vector<2x1x1024xf32> to vector<1x1024xf32>
    %7 = vector.shape_cast %6 : vector<1x1024xf32> to vector<1x1x1024xf32>
    %8 = vector.broadcast %7 : vector<1x1x1024xf32> to vector<2x1x1024xf32>
    %9 = arith.divf %5, %8 : vector<2x1x1024xf32>
    %c0_3 = arith.constant 0 : index
    %c0_4 = arith.constant 0 : index
    %c0_5 = arith.constant 0 : index
    %10 = vector.load %arg2[%c0_3, %c0_4, %c0_5] : memref<2x1x1024xf32, #tpu.memory_space<vmem>>, vector<2x1x1024xf32>
    tpu.vector_store %arg2[%c0_3, %c0_4, %c0_5], %9 {strides = array<i32>} : memref<2x1x1024xf32, #tpu.memory_space<vmem>>, vector<2x1x1024xf32>,
    return
  }
  func.func @transform_0(%arg0: i32) -> (i32, i32, i32) {
    %c0_i32 = arith.constant 0 : i32
    %c0_i32_0 = arith.constant 0 : i32
    %c0_i32_1 = arith.constant 0 : i32
    return %c0_i32, %arg0, %c0_i32_0 : i32, i32, i32
  }
  func.func @transform_1(%arg0: i32) -> (i32, i32, i32) {
    %c0_i32 = arith.constant 0 : i32
    %c0_i32_0 = arith.constant 0 : i32
    %c0_i32_1 = arith.constant 0 : i32
    return %c0_i32, %arg0, %c0_i32_0 : i32, i32, i32
  }
}

</mosaic_0001>

<llo_original>
// kernel: tpu_custom_call.1
$region0: #{tpu_custom_call.1}
  #allocation0 [shape = 'u32[]', space=smem, size = 0x4, offset = 0x4, fixed_abs, tag = 'smem constant byte address 0x4 - core index']
  #allocation1 [shape = 'u32[144,128]{1,0:T(1,128)}', space=vmem, size = 0x12000, scoped, tag = 'internal scratch']
  %s0 = inlined_call_operand.hbm [shape: f32[2,1,1024], index: 0, kind: input, shape index: {}]
  %s1 = inlined_call_operand.hbm [shape: f32[2,1,1024], index: 1, kind: output, shape index: {}]
  %s2 = sld [smem:[#allocation0]]
  $region18: #{tpu_custom_call.1} parent=0
    _
  %s4 = ssub.s32 1, %s2
  %s5 = scalar_select 0, %s4, %s2
  $region1: #{tpu_custom_call.1} parent=0
    #allocation2 [shape = 'u8[8192]{0}', space=vmem, size = 0x2000, scoped, tag = 'input window, operand 0, single buffered']
    #allocation3 [shape = 's32[1]{0}', space=sflag, size = 0x4, scoped, tag = 'scoped memory for tpu_custom_call.1']
    #allocation4 [shape = 's32[1]{0}', space=sflag, size = 0x4, scoped, tag = 'scoped memory for tpu_custom_call.1']
    #allocation5 [shape = 'u8[8192]{0}', space=vmem, size = 0x2000, scoped, tag = 'output window, operand 0, single buffered']
    %6 = vsyncpa [#allocation3], 0
    %7 = vsyncpa [#allocation4], 0
    // Predicated region
    $region2: #{tpu_custom_call.1} parent=1 // pred_check
      _
    $region3: #{tpu_custom_call.1} parent=1 // pred_check_branch
      %9 = sbr.rel (0) target = $region5
    $region4: #{tpu_custom_call.1} parent=1 // pred_region
      %s11 = ssub.s32 256, 256
      %12 = vsyncadd [#allocation3], %s11
      %s13 = sshll.u32 [#allocation2], 4
      %s14 = int_to_ptr.vmem [resolvable:$true] %s13
      %19 = dma.hbm_to_vmem [thread:$0]  %s0, 256, %s14, [#allocation3], 128, 128, 8
    $region5: #{tpu_custom_call.1} parent=1 // pred_fallthru
      _
    // Predicated region
    $region6: #{tpu_custom_call.1} parent=1 // pred_check
      _
    $region7: #{tpu_custom_call.1} parent=1 // pred_check_branch
      %21 = sbr.rel (0) target = $region9
    $region8: #{tpu_custom_call.1} parent=1 // pred_region
      %22 = dma.done [#allocation3], 256
    $region9: #{tpu_custom_call.1} parent=1 // pred_fallthru
      _
    %v23 = vld [vmem:[#allocation2] sm:$0xff]
    %v24 = vld [vmem:[#allocation2 + $0x8] sm:$0xff]
    %v25 = vmax.f32 %v23, %v24
    %v26 = vsub.f32 %v23, %v25
    %v27 = vsub.f32 %v24, %v25
    %v28 = vmul.f32 %v26, 1.442695
    %v29 = vpow.pop %v28
    %v30 = vmul.f32 %v27, 1.442695
    %v31 = vpow.pop %v30
    %v34 = vlaneseq
    %v35 = vshrl.u32 %v34, 7
    %v36 = vsub.s32 0, %v35
    %v37 = vrot.slane %v29, %v36
    %v38 = vlaneseq
    %v39 = vshrl.u32 %v38, 7
    %v40 = vsub.s32 1, %v39
    %v41 = vrot.slane %v29, %v40
    %v42 = vlaneseq
    %v43 = vshrl.u32 %v42, 7
    %v44 = vsub.s32 2, %v43
    %v45 = vrot.slane %v29, %v44
    %v46 = vlaneseq
    %v47 = vshrl.u32 %v46, 7
    %v48 = vsub.s32 3, %v47
    %v49 = vrot.slane %v29, %v48
    %v50 = vlaneseq
    %v51 = vshrl.u32 %v50, 7
    %v52 = vsub.s32 4, %v51
    %v53 = vrot.slane %v29, %v52
    %v54 = vlaneseq
    %v55 = vshrl.u32 %v54, 7
    %v56 = vsub.s32 5, %v55
    %v57 = vrot.slane %v29, %v56
    %v58 = vlaneseq
    %v59 = vshrl.u32 %v58, 7
    %v60 = vsub.s32 6, %v59
    %v61 = vrot.slane %v29, %v60
    %v62 = vlaneseq
    %v63 = vshrl.u32 %v62, 7
    %v64 = vsub.s32 7, %v63
    %v65 = vrot.slane %v29, %v64
    %v66 = vlaneseq
    %v67 = vshrl.u32 %v66, 7
    %v68 = vsub.s32 0, %v67
    %v69 = vrot.slane %v31, %v68
    %v70 = vlaneseq
    %v71 = vshrl.u32 %v70, 7
    %v72 = vsub.s32 1, %v71
    %v73 = vrot.slane %v31, %v72
    %v74 = vlaneseq
    %v75 = vshrl.u32 %v74, 7
    %v76 = vsub.s32 2, %v75
    %v77 = vrot.slane %v31, %v76
    %v78 = vlaneseq
    %v79 = vshrl.u32 %v78, 7
    %v80 = vsub.s32 3, %v79
    %v81 = vrot.slane %v31, %v80
    %v82 = vlaneseq
    %v83 = vshrl.u32 %v82, 7
    %v84 = vsub.s32 4, %v83
    %v85 = vrot.slane %v31, %v84
    %v86 = vlaneseq
    %v87 = vshrl.u32 %v86, 7
    %v88 = vsub.s32 5, %v87
    %v89 = vrot.slane %v31, %v88
    %v90 = vlaneseq
    %v91 = vshrl.u32 %v90, 7
    %v92 = vsub.s32 6, %v91
    %v93 = vrot.slane %v31, %v92
    %v94 = vlaneseq
    %v95 = vshrl.u32 %v94, 7
    %v96 = vsub.s32 7, %v95
    %v97 = vrot.slane %v31, %v96
    %vm114 = vcmask 1040384
    %v115 = vsel %vm114, %v37, 0.0
    %v116 = vsel %vm114, %v69, 0.0
    %v117 = vadd.f32 %v115, %v116
    %v118 = vsel %vm114, %v41, 0.0
    %v119 = vsel %vm114, %v73, 0.0
    %v120 = vadd.f32 %v118, %v119
    %v121 = vsel %vm114, %v45, 0.0
    %v122 = vsel %vm114, %v77, 0.0
    %v123 = vadd.f32 %v121, %v122
    %v124 = vsel %vm114, %v49, 0.0
    %v125 = vsel %vm114, %v81, 0.0
    %v126 = vadd.f32 %v124, %v125
    %v127 = vsel %vm114, %v53, 0.0
    %v128 = vsel %vm114, %v85, 0.0
    %v129 = vadd.f32 %v127, %v128
    %v130 = vsel %vm114, %v57, 0.0
    %v131 = vsel %vm114, %v89, 0.0
    %v132 = vadd.f32 %v130, %v131
    %v133 = vsel %vm114, %v61, 0.0
    %v134 = vsel %vm114, %v93, 0.0
    %v135 = vadd.f32 %v133, %v134
    %v136 = vsel %vm114, %v65, 0.0
    %v137 = vsel %vm114, %v97, 0.0
    %v138 = vadd.f32 %v136, %v137
    %v147 = vcombine.low %v117, %v120
    %v148 = vcombine.low %v123, %v126
    %v149 = vcombine.low %v129, %v132
    %v150 = vcombine.low %v135, %v138
    %v152 = vunpack.c.l.s4 1966171168
    %v153 = vunpack.c.0.s8 %v152
    %v154 = vlaneseq
    %v155 = vshrl.u32 %v154, 7
    %v156 = vsub.s32 %v153, %v155
    %v157 = vrot.slane %v147, %v156
    %v159 = vunpack.c.l.s4 1966171168
    %v160 = vunpack.c.0.s8 %v159
    %v161 = vlaneseq
    %v162 = vshrl.u32 %v161, 7
    %v163 = vsub.s32 %v160, %v162
    %v164 = vrot.slane %v148, %v163
    %v166 = vunpack.c.l.s4 1966171168
    %v167 = vunpack.c.0.s8 %v166
    %v168 = vlaneseq
    %v169 = vshrl.u32 %v168, 7
    %v170 = vsub.s32 %v167, %v169
    %v171 = vrot.slane %v149, %v170
    %v173 = vunpack.c.l.s4 1966171168
    %v174 = vunpack.c.0.s8 %v173
    %v175 = vlaneseq
    %v176 = vshrl.u32 %v175, 7
    %v177 = vsub.s32 %v174, %v176
    %v178 = vrot.slane %v150, %v177
    %v179 = vcombine.low %v157, %v164
    %v180 = vcombine.low %v171, %v178
    %v182 = vunpack.c.l.s4 1966171168
    %v183 = vunpack.c.0.s8 %v182
    %v184 = vlaneseq
    %v185 = vshrl.u32 %v184, 7
    %v186 = vsub.s32 %v183, %v185
    %v187 = vrot.slane %v179, %v186
    %v189 = vunpack.c.l.s4 1966171168
    %v190 = vunpack.c.0.s8 %v189
    %v191 = vlaneseq
    %v192 = vshrl.u32 %v191, 7
    %v193 = vsub.s32 %v190, %v192
    %v194 = vrot.slane %v180, %v193
    %v195 = vcombine.low %v187, %v194
    %v197 = vrcp.pop %v195
    %v198 = vmul.f32 %v29, %v197
    %v199 = vmul.f32 %v31, %v197
    %200 = vst [vmem:[#allocation5] sm:$0xff] %v198
    %201 = vst [vmem:[#allocation5 + $0x8] sm:$0xff] %v199
    // Predicated region
    $region10: #{tpu_custom_call.1} parent=1 // pred_check
      _
    $region11: #{tpu_custom_call.1} parent=1 // pred_check_branch
      %203 = sbr.rel (0) target = $region13
    $region12: #{tpu_custom_call.1} parent=1 // pred_region
      %s205 = ssub.s32 256, 256
      %206 = vsyncadd [#allocation4], %s205
      %s207 = sshll.u32 [#allocation5], 4
      %s208 = int_to_ptr.vmem [resolvable:$true] %s207
      %213 = dma.vmem_to_hbm [thread:$0]  %s208, 256, %s1, [#allocation4], 128, 128, 8
    $region13: #{tpu_custom_call.1} parent=1 // pred_fallthru
      _
    // Predicated region
    $region14: #{tpu_custom_call.1} parent=1 // pred_check
      _
    $region15: #{tpu_custom_call.1} parent=1 // pred_check_branch
      %215 = sbr.rel (0) target = $region17
    $region16: #{tpu_custom_call.1} parent=1 // pred_region
      %216 = dma.done [#allocation4], 256
    $region17: #{tpu_custom_call.1} parent=1 // pred_fallthru
      _
    %217 = vsyncpa [#allocation3], 1
    %218 = vsyncpa [#allocation4], 1

</llo_original>
